<compile_context>
chip_gen: v7x
topology: tpu7x:2x2x1
jax: 0.10.0
libtpu: 0.0.40
codegen_flags: <defaults>
</compile_context>

<pallas_src>
import functools

import jax
import jax.numpy as jnp
from jax.experimental import pallas as pl
from jax.experimental.pallas import tpu as pltpu


def _vmem():
    # whole-array block resident in VMEM (used only for the tiny epilogue)
    return pl.BlockSpec(memory_space=pltpu.MemorySpace.VMEM)


def _ln_rows(x, g, b, eps=1e-5):
    """Row-wise LayerNorm; statistics and affine in float32."""
    x = x.astype(jnp.float32)
    mu = jnp.mean(x, axis=-1, keepdims=True)
    xc = x - mu
    var = jnp.mean(xc * xc, axis=-1, keepdims=True)
    return xc * jax.lax.rsqrt(var + eps) * g + b


# ------------------ kernel 1: patch-embed prologue (fused) ------------------
# conv1 (stride=patch conv as matmul) + class token + positional embedding
# + ln_pre, one grid step per image.

def _prologue_kernel(xp_ref, w_ref, cls_ref, pos_ref, g_ref, b_ref, o_ref):
    xp = xp_ref[0]                                            # [P, C*ph*pw] bf16
    pe = jnp.dot(xp, w_ref[...], preferred_element_type=jnp.float32)  # [P, D]
    pos = pos_ref[...].astype(jnp.float32)                    # [S, D]
    g = g_ref[...]
    b = b_ref[...]
    cls_tok = cls_ref[...] + pos[:1, :]                       # [1, D]
    patch_tok = pe + pos[1:, :]                               # [P, D]
    # LayerNorm is row-wise, so ln(cls row) and ln(patch rows) separately is
    # exactly ln_pre of the concatenated token matrix.
    o_ref[0, :1, :] = _ln_rows(cls_tok, g, b).astype(o_ref.dtype)
    o_ref[0, 1:, :] = _ln_rows(patch_tok, g, b).astype(o_ref.dtype)


def patch_embed_prologue(xp, conv_w, cls_emb, pos_emb, g, b):
    B, P, Cpp = xp.shape
    S, D = pos_emb.shape
    return pl.pallas_call(
        _prologue_kernel,
        out_shape=jax.ShapeDtypeStruct((B, S, D), jnp.float32),
        grid=(B,),
        in_specs=[
            pl.BlockSpec((1, P, Cpp), lambda bb: (bb, 0, 0)),
            pl.BlockSpec((Cpp, D), lambda bb: (0, 0)),
            pl.BlockSpec((1, D), lambda bb: (0, 0)),
            pl.BlockSpec((S, D), lambda bb: (0, 0)),
            pl.BlockSpec((1, D), lambda bb: (0, 0)),
            pl.BlockSpec((1, D), lambda bb: (0, 0)),
        ],
        out_specs=pl.BlockSpec((1, S, D), lambda bb: (bb, 0, 0)),
        compiler_params=pltpu.CompilerParams(
            dimension_semantics=("parallel",),
            vmem_limit_bytes=32 * 1024 * 1024),
    )(xp, conv_w, cls_emb, pos_emb, g, b)


# --------------- kernel 2: fused residual attention block ------------------

def _block_kernel(t_ref, ln1g_ref, ln1b_ref, wqkv_ref, bqkv_ref,
                  wout_ref, bout_ref, ln2g_ref, ln2b_ref,
                  w1_ref, b1_ref, w2_ref, b2_ref, o_ref,
                  *, num_heads, scale):
    x = t_ref[0].astype(jnp.float32)                          # [S, D]
    S, D = x.shape
    Dh = D // num_heads

    # ---- multi-head self-attention: ln1 -> QKV -> per-head softmax(QK^T)V ----
    y1 = _ln_rows(x, ln1g_ref[...], ln1b_ref[...])
    qkv = jnp.dot(y1.astype(jnp.bfloat16), wqkv_ref[...],
                  preferred_element_type=jnp.float32) + bqkv_ref[...]
    q = qkv[:, 0:D] * scale          # fold 1/sqrt(Dh) into q (O(S*D), not O(S*S))
    k = qkv[:, D:2 * D]
    v = qkv[:, 2 * D:3 * D]

    wo = wout_ref[...]               # [D, D] bf16, loaded once, reused per head
    attn = bout_ref[...]             # [1, D] bias; broadcasts on first accumulate
    for h in range(num_heads):       # static unrolled loop over heads
        lo = h * Dh
        hi = lo + Dh
        qh = q[:, lo:hi].astype(jnp.bfloat16)                 # [S, Dh]
        kh_t = k[:, lo:hi].T.astype(jnp.bfloat16)             # [Dh, S]
        vh = v[:, lo:hi].astype(jnp.bfloat16)                 # [S, Dh]
        s = jnp.dot(qh, kh_t, preferred_element_type=jnp.float32)     # [S, S]
        s = s - jnp.max(s, axis=-1, keepdims=True)
        p = jnp.exp(s)
        p = p * pl.reciprocal(jnp.sum(p, axis=-1, keepdims=True), approx=True)
        oh = jnp.dot(p.astype(jnp.bfloat16), vh,
                     preferred_element_type=jnp.float32)               # [S, Dh]
        # Accumulate through the output projection so every intermediate is a
        # lane-dense [S, D] tile (no [S, nH, Dh] tensor with a sub-128 last dim,
        # no concat, no XLA transposes between kernels).
        attn = attn + jnp.dot(oh.astype(jnp.bfloat16), wo[lo:hi, :],
                              preferred_element_type=jnp.float32)
    t1 = x + attn                                             # fused residual add

    # ---- MLP sub-block: ln2 -> W1 -> QuickGELU -> W2, residual fused ----
    y2 = _ln_rows(t1, ln2g_ref[...], ln2b_ref[...])
    hdn = jnp.dot(y2.astype(jnp.bfloat16), w1_ref[...],
                  preferred_element_type=jnp.float32) + b1_ref[...]
    hdn = hdn * jax.nn.sigmoid(1.702 * hdn)                   # QuickGELU (CLIP), f32
    m = jnp.dot(hdn.astype(jnp.bfloat16), w2_ref[...],
                preferred_element_type=jnp.float32) + b2_ref[...]
    o_ref[0] = (t1 + m).astype(o_ref.dtype)


def residual_block(t, blk, *, num_heads, scale):
    B, S, D = t.shape
    Dh = D // num_heads
    kern = functools.partial(_block_kernel, num_heads=num_heads, scale=scale)

    # advisory cost estimate for the XLA scheduler
    flops = B * (2 * S * D * (3 * D + D + 8 * D) + num_heads * 4 * S * S * Dh)
    transcendentals = B * (num_heads * S * S + S * 4 * D)
    weight_bytes = 2 * (3 * D * D + D * D + 8 * D * D)        # bf16 weights
    bytes_accessed = 2 * B * S * D * 4 + weight_bytes + 4 * (14 * D)

    def _w(shape):
        return pl.BlockSpec(shape, lambda bb: (0, 0))         # weights: resident

    return pl.pallas_call(
        kern,
        out_shape=jax.ShapeDtypeStruct((B, S, D), jnp.float32),
        grid=(B,),
        in_specs=[
            pl.BlockSpec((1, S, D), lambda bb: (bb, 0, 0)),   # activations
            _w((1, D)), _w((1, D)),                           # ln1 g, b
            _w((D, 3 * D)), _w((1, 3 * D)),                   # qkv w, b
            _w((D, D)), _w((1, D)),                           # out-proj w, b
            _w((1, D)), _w((1, D)),                           # ln2 g, b
            _w((D, 4 * D)), _w((1, 4 * D)),                   # mlp w1, b1
            _w((4 * D, D)), _w((1, D)),                       # mlp w2, b2
        ],
        out_specs=pl.BlockSpec((1, S, D), lambda bb: (bb, 0, 0)),
        compiler_params=pltpu.CompilerParams(
            dimension_semantics=("parallel",),
            vmem_limit_bytes=32 * 1024 * 1024),
        cost_estimate=pl.CostEstimate(
            flops=int(flops),
            transcendentals=int(transcendentals),
            bytes_accessed=int(bytes_accessed)),
    )(t, blk['ln1_g'], blk['ln1_b'], blk['attn_in_w'], blk['attn_in_b'],
      blk['attn_out_w'], blk['attn_out_b'], blk['ln2_g'], blk['ln2_b'],
      blk['mlp_w1'], blk['mlp_b1'], blk['mlp_w2'], blk['mlp_b2'])


# --------- kernel 3: fused head (ln_post + projection + L2 normalize) -------

def _head_kernel(cls_ref, g_ref, b_ref, proj_ref, o_ref):
    y = _ln_rows(cls_ref[...], g_ref[...], b_ref[...])        # [B, D]
    f = jnp.dot(y.astype(jnp.bfloat16), proj_ref[...],
                preferred_element_type=jnp.float32)           # [B, out_dim]
    # ImageCLIP.forward: x = x / x.norm(dim=-1, keepdim=True)  (eps-guarded)
    n = jnp.sqrt(jnp.sum(f * f, axis=-1, keepdims=True))
    o_ref[...] = (f / jnp.maximum(n, 1e-12)).astype(o_ref.dtype)


def clip_head(cls_tok, g, b, proj):
    B, _ = cls_tok.shape
    out_dim = proj.shape[1]
    return pl.pallas_call(
        _head_kernel,
        out_shape=jax.ShapeDtypeStruct((B, out_dim), jnp.float32),
        in_specs=[_vmem()] * 4,
        out_specs=_vmem(),
    )(cls_tok, g, b, proj)


# ------------------------------ model glue ---------------------------------

def init_params(key, cfg):
    C, patch, D, layers, out_dim = (cfg['in_ch'], cfg['patch'], cfg['width'],
                                    cfg['layers'], cfg['out_dim'])
    seq = cfg['seq']
    ks = jax.random.split(key, 4 + layers)

    def nrm(k, shape, s=0.02, dtype=jnp.bfloat16):
        return (jax.random.normal(k, shape, jnp.float32) * s).astype(dtype)

    p = {
        # matmul weights stored bf16 (MXU-native, half the HBM/DMA bytes)
        'conv1_w': nrm(ks[0], (C * patch * patch, D)),
        'proj': nrm(ks[3], (D, out_dim)),
        # embeddings / norms / biases stay f32
        'class_embedding': nrm(ks[1], (1, D), 0.02, jnp.float32),
        'positional_embedding': nrm(ks[2], (seq, D), 0.01, jnp.float32),
        'ln_pre_g': jnp.ones((1, D), jnp.float32),
        'ln_pre_b': jnp.zeros((1, D), jnp.float32),
        'ln_post_g': jnp.ones((1, D), jnp.float32),
        'ln_post_b': jnp.zeros((1, D), jnp.float32),
        'blocks': [],
    }
    for l in range(layers):
        kb = jax.random.split(ks[4 + l], 4)
        p['blocks'].append({
            'ln1_g': jnp.ones((1, D), jnp.float32),
            'ln1_b': jnp.zeros((1, D), jnp.float32),
            'attn_in_w': nrm(kb[0], (D, 3 * D)),
            'attn_in_b': jnp.zeros((1, 3 * D), jnp.float32),
            'attn_out_w': nrm(kb[1], (D, D)),
            'attn_out_b': jnp.zeros((1, D), jnp.float32),
            'ln2_g': jnp.ones((1, D), jnp.float32),
            'ln2_b': jnp.zeros((1, D), jnp.float32),
            'mlp_w1': nrm(kb[2], (D, 4 * D)),
            'mlp_b1': jnp.zeros((1, 4 * D), jnp.float32),
            'mlp_w2': nrm(kb[3], (4 * D, D)),
            'mlp_b2': jnp.zeros((1, D), jnp.float32),
        })
    return p


def image_clip_forward(x, params, cfg):
    B, C, H, W = x.shape
    patch, D, nH = cfg['patch'], cfg['width'], cfg['heads']
    gh, gw = H // patch, W // patch
    Dh = D // nH
    scale = 1.0 / (Dh ** 0.5)

    # NCHW -> patch matrix [B, P, C*ph*pw] (Conv2d stride=patch as matmul),
    # cast to bf16 so the prologue's MXU operands / input DMA are half-width.
    xp = (x.reshape(B, C, gh, patch, gw, patch)
           .transpose(0, 2, 4, 1, 3, 5)
           .reshape(B, gh * gw, C * patch * patch)
           .astype(jnp.bfloat16))

    # patch embed + class token + pos embed + ln_pre (one fused kernel)
    t = patch_embed_prologue(xp, params['conv1_w'],
                             params['class_embedding'],
                             params['positional_embedding'],
                             params['ln_pre_g'], params['ln_pre_b'])

    # one fused pallas_call per residual attention block
    for blk in params['blocks']:
        t = residual_block(t, blk, num_heads=nH, scale=scale)

    # ln_post on CLS + projection + L2 normalize (one fused kernel)
    cls_tok = t[:, 0, :]                                      # [B, D]
    return clip_head(cls_tok, params['ln_post_g'], params['ln_post_b'],
                     params['proj'])


# ------------------------------- driver -------------------------------------

if __name__ == "__main__":
    cfg = dict(in_ch=3, patch=8, width=128, heads=4, layers=2, out_dim=128)
    B, C, H, W = 2, cfg['in_ch'], 16, 16
    cfg['seq'] = (H // cfg['patch']) * (W // cfg['patch']) + 1   # 5 tokens

    key = jax.random.PRNGKey(0)
    kx, kp = jax.random.split(key)
    x = jax.random.normal(kx, (B, C, H, W), jnp.float32)
    params = init_params(kp, cfg)

    out = image_clip_forward(x, params, cfg)
    out = jax.block_until_ready(out)

    assert out.shape == (B, cfg['out_dim']), out.shape
    norms = jnp.linalg.norm(out, axis=-1)
    assert bool(jnp.all(jnp.abs(norms - 1.0) < 1e-4)), norms
    print("KERNEL_OK")
</pallas_src>

<mosaic_0001>
module attributes {stable_mosaic.version = 11 : i64} {
  func.func @_prologue_kernel(%arg0: i32, %arg1: memref<1x4x192xbf16, #tpu.memory_space<vmem>>, %arg2: memref<192x128xbf16, #tpu.memory_space<vmem>>, %arg3: memref<1x128xf32, #tpu.memory_space<vmem>>, %arg4: memref<5x128xf32, #tpu.memory_space<vmem>>, %arg5: memref<1x128xf32, #tpu.memory_space<vmem>>, %arg6: memref<1x128xf32, #tpu.memory_space<vmem>>, %arg7: memref<1x5x128xf32, #tpu.memory_space<vmem>>) attributes {dimension_semantics = [#tpu.dimension_semantics<parallel>], iteration_bounds = array<i64: 2>, scalar_prefetch = 0 : i64, scratch_operands = 0 : i64, tpu.core_type = #tpu.core_type<tc>, window_params = [{transform_indices = @transform_0, window_bounds = array<i64: 1, 4, 192>}, {pipeline_mode = #tpu.pipeline_mode<synchronous>, transform_indices = @transform_1, window_bounds = array<i64: 192, 128>}, {pipeline_mode = #tpu.pipeline_mode<synchronous>, transform_indices = @transform_2, window_bounds = array<i64: 1, 128>}, {pipeline_mode = #tpu.pipeline_mode<synchronous>, transform_indices = @transform_3, window_bounds = array<i64: 5, 128>}, {pipeline_mode = #tpu.pipeline_mode<synchronous>, transform_indices = @transform_4, window_bounds = array<i64: 1, 128>}, {pipeline_mode = #tpu.pipeline_mode<synchronous>, transform_indices = @transform_5, window_bounds = array<i64: 1, 128>}, {transform_indices = @transform_6, window_bounds = array<i64: 1, 5, 128>}]} {
    %c0 = arith.constant 0 : index
    %c0_0 = arith.constant 0 : index
    %c0_1 = arith.constant 0 : index
    %0 = vector.load %arg1[%c0, %c0_0, %c0_1] : memref<1x4x192xbf16, #tpu.memory_space<vmem>>, vector<1x4x192xbf16>
    %1 = vector.shape_cast %0 : vector<1x4x192xbf16> to vector<4x192xbf16>
    %c0_2 = arith.constant 0 : index
    %c0_3 = arith.constant 0 : index
    %2 = vector.load %arg2[%c0_2, %c0_3] : memref<192x128xbf16, #tpu.memory_space<vmem>>, vector<192x128xbf16>
    %cst = arith.constant dense<0.000000e+00> : vector<4x128xf32>
    %3 = tpu.matmul %1, %2, %cst {dimension_numbers = #tpu.dot_dimension_numbers<[1], [0], [0], [1], [0, 0, 1, 1], [], []>} : vector<4x192xbf16>, vector<192x128xbf16>, vector<4x128xf32> -> vector<4x128xf32>
    %c0_4 = arith.constant 0 : index
    %c0_5 = arith.constant 0 : index
    %4 = vector.load %arg4[%c0_4, %c0_5] : memref<5x128xf32, #tpu.memory_space<vmem>>, vector<5x128xf32>
    %c0_6 = arith.constant 0 : index
    %c0_7 = arith.constant 0 : index
    %5 = vector.load %arg5[%c0_6, %c0_7] : memref<1x128xf32, #tpu.memory_space<vmem>>, vector<1x128xf32>
    %c0_8 = arith.constant 0 : index
    %c0_9 = arith.constant 0 : index
    %6 = vector.load %arg6[%c0_8, %c0_9] : memref<1x128xf32, #tpu.memory_space<vmem>>, vector<1x128xf32>
    %c0_10 = arith.constant 0 : index
    %c0_11 = arith.constant 0 : index
    %7 = vector.load %arg3[%c0_10, %c0_11] : memref<1x128xf32, #tpu.memory_space<vmem>>, vector<1x128xf32>
    %8 = vector.extract_strided_slice %4 {offsets = [0, 0], sizes = [1, 128], strides = [1, 1]} : vector<5x128xf32> to vector<1x128xf32>
    %9 = arith.addf %7, %8 : vector<1x128xf32>
    %10 = vector.extract_strided_slice %4 {offsets = [1, 0], sizes = [4, 128], strides = [1, 1]} : vector<5x128xf32> to vector<4x128xf32>
    %11 = arith.addf %3, %10 : vector<4x128xf32>
    %cst_12 = arith.constant dense<0.000000e+00> : vector<1xf32>
    %12 = vector.multi_reduction <add>, %9, %cst_12 [1] : vector<1x128xf32> to vector<1xf32>
    %13 = vector.shape_cast %12 : vector<1xf32> to vector<1x1xf32>
    %cst_13 = arith.constant 1.280000e+02 : f32
    %14 = vector.broadcast %cst_13 : f32 to vector<1x1xf32>
    %15 = arith.divf %13, %14 : vector<1x1xf32>
    %16 = vector.broadcast %15 : vector<1x1xf32> to vector<1x128xf32>
    %17 = arith.subf %9, %16 : vector<1x128xf32>
    %18 = arith.mulf %17, %17 : vector<1x128xf32>
    %cst_14 = arith.constant dense<0.000000e+00> : vector<1xf32>
    %19 = vector.multi_reduction <add>, %18, %cst_14 [1] : vector<1x128xf32> to vector<1xf32>
    %20 = vector.shape_cast %19 : vector<1xf32> to vector<1x1xf32>
    %cst_15 = arith.constant 1.280000e+02 : f32
    %21 = vector.broadcast %cst_15 : f32 to vector<1x1xf32>
    %22 = arith.divf %20, %21 : vector<1x1xf32>
    %cst_16 = arith.constant 9.99999974E-6 : f32
    %23 = vector.broadcast %cst_16 : f32 to vector<1x1xf32>
    %24 = arith.addf %22, %23 : vector<1x1xf32>
    %25 = math.rsqrt %24 : vector<1x1xf32>
    %26 = vector.broadcast %25 : vector<1x1xf32> to vector<1x128xf32>
    %27 = arith.mulf %17, %26 : vector<1x128xf32>
    %28 = arith.mulf %27, %5 : vector<1x128xf32>
    %29 = arith.addf %28, %6 : vector<1x128xf32>
    %c0_17 = arith.constant 0 : index
    %c0_18 = arith.constant 0 : index
    %c0_19 = arith.constant 0 : index
    %30 = vector.load %arg7[%c0_17, %c0_18, %c0_19] : memref<1x5x128xf32, #tpu.memory_space<vmem>>, vector<1x1x128xf32>
    %31 = vector.shape_cast %30 : vector<1x1x128xf32> to vector<1x128xf32>
    %32 = vector.shape_cast %29 : vector<1x128xf32> to vector<1x1x128xf32>
    tpu.vector_store %arg7[%c0_17, %c0_18, %c0_19], %32 {strides = array<i32>} : memref<1x5x128xf32, #tpu.memory_space<vmem>>, vector<1x1x128xf32>,
    %cst_20 = arith.constant dense<0.000000e+00> : vector<4xf32>
    %33 = vector.multi_reduction <add>, %11, %cst_20 [1] : vector<4x128xf32> to vector<4xf32>
    %34 = vector.shape_cast %33 : vector<4xf32> to vector<4x1xf32>
    %cst_21 = arith.constant 1.280000e+02 : f32
    %35 = vector.broadcast %cst_21 : f32 to vector<4x1xf32>
    %36 = arith.divf %34, %35 : vector<4x1xf32>
    %37 = vector.broadcast %36 : vector<4x1xf32> to vector<4x128xf32>
    %38 = arith.subf %11, %37 : vector<4x128xf32>
    %39 = arith.mulf %38, %38 : vector<4x128xf32>
    %cst_22 = arith.constant dense<0.000000e+00> : vector<4xf32>
    %40 = vector.multi_reduction <add>, %39, %cst_22 [1] : vector<4x128xf32> to vector<4xf32>
    %41 = vector.shape_cast %40 : vector<4xf32> to vector<4x1xf32>
    %cst_23 = arith.constant 1.280000e+02 : f32
    %42 = vector.broadcast %cst_23 : f32 to vector<4x1xf32>
    %43 = arith.divf %41, %42 : vector<4x1xf32>
    %cst_24 = arith.constant 9.99999974E-6 : f32
    %44 = vector.broadcast %cst_24 : f32 to vector<4x1xf32>
    %45 = arith.addf %43, %44 : vector<4x1xf32>
    %46 = math.rsqrt %45 : vector<4x1xf32>
    %47 = vector.broadcast %46 : vector<4x1xf32> to vector<4x128xf32>
    %48 = arith.mulf %38, %47 : vector<4x128xf32>
    %49 = vector.broadcast %5 : vector<1x128xf32> to vector<4x128xf32>
    %50 = arith.mulf %48, %49 : vector<4x128xf32>
    %51 = vector.broadcast %6 : vector<1x128xf32> to vector<4x128xf32>
    %52 = arith.addf %50, %51 : vector<4x128xf32>
    %c0_25 = arith.constant 0 : index
    %c1 = arith.constant 1 : index
    %c0_26 = arith.constant 0 : index
    %53 = vector.load %arg7[%c0_25, %c1, %c0_26] : memref<1x5x128xf32, #tpu.memory_space<vmem>>, vector<1x4x128xf32>
    %54 = vector.shape_cast %53 : vector<1x4x128xf32> to vector<4x128xf32>
    %55 = vector.shape_cast %52 : vector<4x128xf32> to vector<1x4x128xf32>
    tpu.vector_store %arg7[%c0_25, %c1, %c0_26], %55 {strides = array<i32>} : memref<1x5x128xf32, #tpu.memory_space<vmem>>, vector<1x4x128xf32>,
    return
  }
  func.func @transform_0(%arg0: i32) -> (i32, i32, i32) {
    %c0_i32 = arith.constant 0 : i32
    %c0_i32_0 = arith.constant 0 : i32
    %c0_i32_1 = arith.constant 0 : i32
    return %arg0, %c0_i32, %c0_i32_0 : i32, i32, i32
  }
  func.func @transform_1(%arg0: i32) -> (i32, i32) {
    %c0_i32 = arith.constant 0 : i32
    %c0_i32_0 = arith.constant 0 : i32
    %c0_i32_1 = arith.constant 0 : i32
    return %c0_i32, %c0_i32_0 : i32, i32
  }
  func.func @transform_2(%arg0: i32) -> (i32, i32) {
    %c0_i32 = arith.constant 0 : i32
    %c0_i32_0 = arith.constant 0 : i32
    %c0_i32_1 = arith.constant 0 : i32
    return %c0_i32, %c0_i32_0 : i32, i32
  }
  func.func @transform_3(%arg0: i32) -> (i32, i32) {
    %c0_i32 = arith.constant 0 : i32
    %c0_i32_0 = arith.constant 0 : i32
    %c0_i32_1 = arith.constant 0 : i32
    return %c0_i32, %c0_i32_0 : i32, i32
  }
  func.func @transform_4(%arg0: i32) -> (i32, i32) {
    %c0_i32 = arith.constant 0 : i32
    %c0_i32_0 = arith.constant 0 : i32
    %c0_i32_1 = arith.constant 0 : i32
    return %c0_i32, %c0_i32_0 : i32, i32
  }
  func.func @transform_5(%arg0: i32) -> (i32, i32) {
    %c0_i32 = arith.constant 0 : i32
    %c0_i32_0 = arith.constant 0 : i32
    %c0_i32_1 = arith.constant 0 : i32
    return %c0_i32, %c0_i32_0 : i32, i32
  }
  func.func @transform_6(%arg0: i32) -> (i32, i32, i32) {
    %c0_i32 = arith.constant 0 : i32
    %c0_i32_0 = arith.constant 0 : i32
    %c0_i32_1 = arith.constant 0 : i32
    return %arg0, %c0_i32, %c0_i32_0 : i32, i32, i32
  }
}

</mosaic_0001>

<llo_original>
// kernel: tpu_custom_call.1
$region0: #{tpu_custom_call.1}
  #allocation0 [shape = 'u32[]', space=smem, size = 0x4, offset = 0x4, fixed_abs, tag = 'smem constant byte address 0x4 - core index']
  #allocation1 [shape = 'u32[144,128]{1,0:T(1,128)}', space=vmem, size = 0x12000, scoped, tag = 'internal scratch']
  %s0 = inlined_call_operand.hbm [shape: bf16[2,4,192], index: 0, kind: input, shape index: {}]
  %s1 = inlined_call_operand.hbm [shape: bf16[192,128], index: 1, kind: input, shape index: {}]
  %s2 = inlined_call_operand.vmem [shape: f32[1,128], index: 2, kind: input, shape index: {}]
  %s3 = inlined_call_operand.vmem [shape: f32[5,128], index: 3, kind: input, shape index: {}]
  %s4 = inlined_call_operand.vmem [shape: f32[1,128], index: 4, kind: input, shape index: {}]
  %s5 = inlined_call_operand.vmem [shape: f32[1,128], index: 5, kind: input, shape index: {}]
  %s6 = inlined_call_operand.vmem [shape: f32[2,5,128], index: 6, kind: output, shape index: {}]
  %s7 = sld [smem:[#allocation0]]
  $region65: #{tpu_custom_call.1} parent=0
    _
  %s9 = ssub.s32 1, %s7
  %s10 = scalar_select 0, %s9, %s7
  $region1: #{tpu_custom_call.1} parent=0
    #allocation2 [shape = 'u8[4096]{0}', space=vmem, size = 0x1000, scoped, tag = 'input window, operand 0']
    #allocation3 [shape = 's32[2]{0}', space=sflag, size = 0x8, scoped, tag = 'scoped memory for tpu_custom_call.1']
    #allocation4 [shape = 'u8[49152]{0}', space=vmem, size = 0xc000, scoped, tag = 'input window, operand 1, single buffered']
    #allocation5 [shape = 's32[1]{0}', space=sflag, size = 0x4, scoped, tag = 'scoped memory for tpu_custom_call.1']
    %11 = vsyncpa [#allocation3], 0
    %s12 = scalar_lea.sflag [#allocation3], 1
    %13 = vsyncpa %s12, 0
    %14 = vsyncpa [#allocation5], 0
    loop: start=0, step=1, limit=4
    $region2: #{tpu_custom_call.1} parent=1 // loop_pre_header
      _
    $region3: #{tpu_custom_call.1} parent=1 // loop_header
      %s16 = sphi 0, %s20
      %p17 = scmp.ge.s32.totalorder %s16, 4
      %s26 = sphi 0, %s28
      %s29 = sphi 0, %s26
      %s30 = sphi 0, %s29
      %s46 = sphi 0, %s30
      %s50 = sphi 0, %s50
      %s52 = sphi 0, %s50
      %s53 = sphi 0, %s52
      %s67 = sphi 0, %s53
      %s71 = sphi 0, %s71
      %s73 = sphi 0, %s71
      %s74 = sphi 0, %s73
      %s88 = sphi 0, %s74
      %s92 = sphi 0, %s92
      %s94 = sphi 0, %s92
      %s95 = sphi 0, %s94
      %s109 = sphi 0, %s95
      %s113 = sphi 0, %s113
      %s115 = sphi 0, %s113
      %s116 = sphi 0, %s115
      %s130 = sphi 0, %s116
      %s134 = sphi 0, %s134
      %s136 = sphi 0, %s134
      %s137 = sphi 0, %s136
      %s151 = sphi 0, %s137
      %s157 = sphi 0, %s159
      %s160 = sphi 0, %s157
      %s161 = sphi 0, %s160
      %s177 = sphi 0, %s161
    $region4: #{tpu_custom_call.1} parent=1 // loop_header_branch
      %19 = sbr.rel (%p17) target = $region8
    $region5: #{tpu_custom_call.1} parent=1 // loop_body
      %s21 = ssub.s32 %s16, 1
      %s22 = ssub.s32 %s16, 2
      %s23 = sadd.s32 %s16, 1
      %s24 = ssub.s32 %s16, %s23
      %p25 = scmp.eq.s32.totalorder %s24, 0
      %s27 = sadd.s32 %s26, 1
      %s28 = scalar_select %p25, %s26, %s27
      %p31 = pneg %p25
      %p32 = scmp.eq.s32.totalorder %s16, 1
      %p33 = por %p31, %p32
      %p34 = scmp.ne.s32.totalorder %s26, %s29
      %p35 = scmp.eq.s32.totalorder %s16, 0
      %p36 = por %p34, %p35
      %p37 = scmp.ne.s32.totalorder %s26, %s29
      %p38 = scmp.eq.s32.totalorder %s21, 1
      %p39 = por %p37, %p38
      %p40 = scmp.ne.s32.totalorder %s29, %s30
      %p41 = scmp.eq.s32.totalorder %s21, 0
      %p42 = por %p40, %p41
      %p43 = scmp.ne.s32.totalorder %s29, %s30
      %p44 = scmp.eq.s32.totalorder %s22, 1
      %p45 = por %p43, %p44
      %p47 = scmp.ne.s32.totalorder %s30, %s46
      %p48 = scmp.eq.s32.totalorder %s22, 0
      %p49 = por %p47, %p48
      %s51 = sadd.s32 %s50, 1
      %p54 = scmp.eq.s32.totalorder %s16, 1
      %p55 = scmp.ne.s32.totalorder %s50, %s52
      %p56 = scmp.eq.s32.totalorder %s16, 0
      %p57 = por %p55, %p56
      %p58 = scmp.ne.s32.totalorder %s50, %s52
      %p59 = scmp.eq.s32.totalorder %s21, 1
      %p60 = por %p58, %p59
      %p61 = scmp.ne.s32.totalorder %s52, %s53
      %p62 = scmp.eq.s32.totalorder %s21, 0
      %p63 = por %p61, %p62
      %p64 = scmp.ne.s32.totalorder %s52, %s53
      %p65 = scmp.eq.s32.totalorder %s22, 1
      %p66 = por %p64, %p65
      %p68 = scmp.ne.s32.totalorder %s53, %s67
      %p69 = scmp.eq.s32.totalorder %s22, 0
      %p70 = por %p68, %p69
      %s72 = sadd.s32 %s71, 1
      %p75 = scmp.eq.s32.totalorder %s16, 1
      %p76 = scmp.ne.s32.totalorder %s71, %s73
      %p77 = scmp.eq.s32.totalorder %s16, 0
      %p78 = por %p76, %p77
      %p79 = scmp.ne.s32.totalorder %s71, %s73
      %p80 = scmp.eq.s32.totalorder %s21, 1
      %p81 = por %p79, %p80
      %p82 = scmp.ne.s32.totalorder %s73, %s74
      %p83 = scmp.eq.s32.totalorder %s21, 0
      %p84 = por %p82, %p83
      %p85 = scmp.ne.s32.totalorder %s73, %s74
      %p86 = scmp.eq.s32.totalorder %s22, 1
      %p87 = por %p85, %p86
      %p89 = scmp.ne.s32.totalorder %s74, %s88
      %p90 = scmp.eq.s32.totalorder %s22, 0
      %p91 = por %p89, %p90
      %s93 = sadd.s32 %s92, 1
      %p96 = scmp.eq.s32.totalorder %s16, 1
      %p97 = scmp.ne.s32.totalorder %s92, %s94
      %p98 = scmp.eq.s32.totalorder %s16, 0
      %p99 = por %p97, %p98
      %p100 = scmp.ne.s32.totalorder %s92, %s94
      %p101 = scmp.eq.s32.totalorder %s21, 1
      %p102 = por %p100, %p101
      %p103 = scmp.ne.s32.totalorder %s94, %s95
      %p104 = scmp.eq.s32.totalorder %s21, 0
      %p105 = por %p103, %p104
      %p106 = scmp.ne.s32.totalorder %s94, %s95
      %p107 = scmp.eq.s32.totalorder %s22, 1
      %p108 = por %p106, %p107
      %p110 = scmp.ne.s32.totalorder %s95, %s109
      %p111 = scmp.eq.s32.totalorder %s22, 0
      %p112 = por %p110, %p111
      %s114 = sadd.s32 %s113, 1
      %p117 = scmp.eq.s32.totalorder %s16, 1
      %p118 = scmp.ne.s32.totalorder %s113, %s115
      %p119 = scmp.eq.s32.totalorder %s16, 0
      %p120 = por %p118, %p119
      %p121 = scmp.ne.s32.totalorder %s113, %s115
      %p122 = scmp.eq.s32.totalorder %s21, 1
      %p123 = por %p121, %p122
      %p124 = scmp.ne.s32.totalorder %s115, %s116
      %p125 = scmp.eq.s32.totalorder %s21, 0
      %p126 = por %p124, %p125
      %p127 = scmp.ne.s32.totalorder %s115, %s116
      %p128 = scmp.eq.s32.totalorder %s22, 1
      %p129 = por %p127, %p128
      %p131 = scmp.ne.s32.totalorder %s116, %s130
      %p132 = scmp.eq.s32.totalorder %s22, 0
      %p133 = por %p131, %p132
      %s135 = sadd.s32 %s134, 1
      %p138 = scmp.eq.s32.totalorder %s16, 1
      %p139 = scmp.ne.s32.totalorder %s134, %s136
      %p140 = scmp.eq.s32.totalorder %s16, 0
      %p141 = por %p139, %p140
      %p142 = scmp.ne.s32.totalorder %s134, %s136
      %p143 = scmp.eq.s32.totalorder %s21, 1
      %p144 = por %p142, %p143
      %p145 = scmp.ne.s32.totalorder %s136, %s137
      %p146 = scmp.eq.s32.totalorder %s21, 0
      %p147 = por %p145, %p146
      %p148 = scmp.ne.s32.totalorder %s136, %s137
      %p149 = scmp.eq.s32.totalorder %s22, 1
      %p150 = por %p148, %p149
      %p152 = scmp.ne.s32.totalorder %s137, %s151
      %p153 = scmp.eq.s32.totalorder %s22, 0
      %p154 = por %p152, %p153
      %s155 = ssub.s32 %s16, %s23
      %p156 = scmp.eq.s32.totalorder %s155, 0
      %s158 = sadd.s32 %s157, 1
      %s159 = scalar_select %p156, %s157, %s158
      %p162 = pneg %p156
      %p163 = scmp.eq.s32.totalorder %s16, 1
      %p164 = por %p162, %p163
      %p165 = scmp.ne.s32.totalorder %s157, %s160
      %p166 = scmp.eq.s32.totalorder %s16, 0
      %p167 = por %p165, %p166
      %p168 = scmp.ne.s32.totalorder %s157, %s160
      %p169 = scmp.eq.s32.totalorder %s21, 1
      %p170 = por %p168, %p169
      %p171 = scmp.ne.s32.totalorder %s160, %s161
      %p172 = scmp.eq.s32.totalorder %s21, 0
      %p173 = por %p171, %p172
      %p174 = scmp.ne.s32.totalorder %s160, %s161
      %p175 = scmp.eq.s32.totalorder %s22, 1
      %p176 = por %p174, %p175
      %p178 = scmp.ne.s32.totalorder %s161, %s177
      %p179 = scmp.eq.s32.totalorder %s22, 0
      %p180 = por %p178, %p179
      %p181 = scmp.le.s32.totalorder 1, %s16
      %p182 = scmp.lt.s32.totalorder %s16, 3
      %p183 = pnand %p181, %p182
      %p184 = pneg %p183
      // Predicated region
      $region9: #{tpu_custom_call.1} parent=5 // pred_check
        _
      $region10: #{tpu_custom_call.1} parent=5 // pred_check_branch
        %186 = sbr.rel (%p183) target = $region12
      $region11: #{tpu_custom_call.1} parent=5 // pred_region
        %s187 = ssub.s32 %s16, 1
        // Predicated region
        $region13: #{tpu_custom_call.1} parent=11 // pred_check
          %p188 = pneg %p63
        $region14: #{tpu_custom_call.1} parent=11 // pred_check_branch
          %190 = sbr.rel (%p188) target = $region16
        $region15: #{tpu_custom_call.1} parent=11 // pred_region
          %s192 = ssub.s32 1536, 1536
          %193 = vsyncadd [#allocation5], %s192
          %s194 = sshll.u32 [#allocation4], 4
          %s195 = int_to_ptr.vmem [resolvable:$true] %s194
          %200 = dma.hbm_to_vmem [thread:$0]  %s1, 1536, %s195, [#allocation5], 64, 64, 4
        $region16: #{tpu_custom_call.1} parent=11 // pred_fallthru
          _
        // Predicated region
        $region17: #{tpu_custom_call.1} parent=11 // pred_check
          %p201 = pneg %p84
        $region18: #{tpu_custom_call.1} parent=11 // pred_check_branch
          %203 = sbr.rel (%p201) target = $region20
        $region19: #{tpu_custom_call.1} parent=11 // pred_region
          _
        $region20: #{tpu_custom_call.1} parent=11 // pred_fallthru
          _
        // Predicated region
        $region21: #{tpu_custom_call.1} parent=11 // pred_check
          %p204 = pneg %p105
        $region22: #{tpu_custom_call.1} parent=11 // pred_check_branch
          %206 = sbr.rel (%p204) target = $region24
        $region23: #{tpu_custom_call.1} parent=11 // pred_region
          _
        $region24: #{tpu_custom_call.1} parent=11 // pred_fallthru
          _
        // Predicated region
        $region25: #{tpu_custom_call.1} parent=11 // pred_check
          %p207 = pneg %p126
        $region26: #{tpu_custom_call.1} parent=11 // pred_check_branch
          %209 = sbr.rel (%p207) target = $region28
        $region27: #{tpu_custom_call.1} parent=11 // pred_region
          _
        $region28: #{tpu_custom_call.1} parent=11 // pred_fallthru
          _
        // Predicated region
        $region29: #{tpu_custom_call.1} parent=11 // pred_check
          %p210 = pneg %p147
        $region30: #{tpu_custom_call.1} parent=11 // pred_check_branch
          %212 = sbr.rel (%p210) target = $region32
        $region31: #{tpu_custom_call.1} parent=11 // pred_region
          _
        $region32: #{tpu_custom_call.1} parent=11 // pred_fallthru
          _
      $region12: #{tpu_custom_call.1} parent=5 // pred_fallthru
        _
      %p213 = scmp.lt.s32.totalorder %s16, 2
      // Predicated region
      $region33: #{tpu_custom_call.1} parent=5 // pred_check
        %p214 = pneg %p213
      $region34: #{tpu_custom_call.1} parent=5 // pred_check_branch
        %216 = sbr.rel (%p214) target = $region36
      $region35: #{tpu_custom_call.1} parent=5 // pred_region
        // Predicated region
        $region37: #{tpu_custom_call.1} parent=35 // pred_check
          %p217 = pneg %p36
        $region38: #{tpu_custom_call.1} parent=35 // pred_check_branch
          %219 = sbr.rel (%p217) target = $region40
        $region39: #{tpu_custom_call.1} parent=35 // pred_region
          %s220 = sand.u32 %s26, 1
          %s221 = scalar_lea.sflag [#allocation3], %s220
          %s222 = sand.u32 %s26, 1
          %s223 = smul.addr %s222, 4
          %s224 = scalar_lea.vmem [#allocation2], %s223
          %s226 = ssub.s32 64, 64
          %227 = vsyncadd %s221, %s226
          %s228 = smul.addr %s16, 2
          %s229 = smul.addr %s228, 32
          %s230 = scalar_lea.hbm %s0, %s229
          %s232 = sshll.u32 %s224, 4
          %s233 = int_to_ptr.vmem [resolvable:$true] %s232
          %235 = dma.hbm_to_vmem [thread:$0]  %s230, 64, %s233, %s221
        $region40: #{tpu_custom_call.1} parent=35 // pred_fallthru
          _
      $region36: #{tpu_custom_call.1} parent=5 // pred_fallthru
        _
      %p236 = scmp.le.s32.totalorder 1, %s16
      %p237 = scmp.lt.s32.totalorder %s16, 3
      %p238 = pnand %p236, %p237
      %p239 = pneg %p238
      // Predicated region
      $region41: #{tpu_custom_call.1} parent=5 // pred_check
        _
      $region42: #{tpu_custom_call.1} parent=5 // pred_check_branch
        %241 = sbr.rel (%p238) target = $region44
      $region43: #{tpu_custom_call.1} parent=5 // pred_region
        %s242 = ssub.s32 %s16, 1
        %s243 = sand.u32 %s29, 1
        %s244 = scalar_lea.sflag [#allocation3], %s243
        %s245 = sand.u32 %s29, 1
        %s246 = smul.addr %s245, 4
        %s247 = scalar_lea.vmem [#allocation2], %s246
        // Predicated region
        $region45: #{tpu_custom_call.1} parent=43 // pred_check
          %p248 = pneg %p42
        $region46: #{tpu_custom_call.1} parent=43 // pred_check_branch
          %250 = sbr.rel (%p248) target = $region48
        $region47: #{tpu_custom_call.1} parent=43 // pred_region
          %251 = dma.done %s244, 64
        $region48: #{tpu_custom_call.1} parent=43 // pred_fallthru
          _
        // Predicated region
        $region49: #{tpu_custom_call.1} parent=43 // pred_check
          %p252 = pneg %p63
        $region50: #{tpu_custom_call.1} parent=43 // pred_check_branch
          %254 = sbr.rel (%p252) target = $region52
        $region51: #{tpu_custom_call.1} parent=43 // pred_region
          %255 = dma.done [#allocation5], 1536
        $region52: #{tpu_custom_call.1} parent=43 // pred_fallthru
          _
        %s256 = sand.u32 %s29, 1
        %s257 = scalar_lea.sflag [#allocation3], %s256
        %s258 = sand.u32 %s29, 1
        %s259 = smul.addr %s258, 4
        %s260 = scalar_lea.vmem [#allocation2], %s259
        %p261 = pneg %p42
        %p262 = pneg %p39
        %p263 = pneg %p63
        %p264 = pneg %p60
        %p265 = pneg %p84
        %p266 = pneg %p81
        %p267 = pneg %p105
        %p268 = pneg %p102
        %p269 = pneg %p126
        %p270 = pneg %p123
        %p271 = pneg %p147
        %p272 = pneg %p144
        %p273 = pneg %p173
        %p274 = pneg %p170
        %p275 = scmp.lt.s32.totalorder %s21, 1
        %s276 = scalar_select %p275, %s21, 1
        %s277 = smul.addr %s276, 8
        %s278 = scalar_lea.vmem %s6, %s277
        %p279 = scmp.lt.s32.totalorder %s21, 1
        %s280 = scalar_select %p279, %s21, 1
        %s281 = smul.addr %s280, 8
        %s282 = scalar_lea.vmem %s6, %s281
        %v284 = vld [vmem:[%s247] sm:$0xf]
        %v285 = vld [vmem:[#allocation4] sm:$0xf]
        %v286 = vld [vmem:[#allocation4 + $0x4] sm:$0xf]
        %v287 = vld [vmem:[#allocation4 + $0x8] sm:$0xf]
        %v288 = vld [vmem:[#allocation4 + $0xc] sm:$0xf]
        %v289 = vld [vmem:[#allocation4 + $0x10] sm:$0xf]
        %v290 = vld [vmem:[#allocation4 + $0x14] sm:$0xf]
        %v291 = vld [vmem:[#allocation4 + $0x18] sm:$0xf]
        %v292 = vld [vmem:[#allocation4 + $0x1c] sm:$0xf]
        %v293 = vld [vmem:[#allocation4 + $0x20] sm:$0xf]
        %v294 = vld [vmem:[#allocation4 + $0x24] sm:$0xf]
        %v295 = vld [vmem:[#allocation4 + $0x28] sm:$0xf]
        %v296 = vld [vmem:[#allocation4 + $0x2c] sm:$0xf]
        %v297 = vld [vmem:[#allocation4 + $0x30] sm:$0xf]
        %v298 = vld [vmem:[#allocation4 + $0x34] sm:$0xf]
        %v299 = vld [vmem:[#allocation4 + $0x38] sm:$0xf]
        %v300 = vld [vmem:[#allocation4 + $0x3c] sm:$0xf]
        %v301 = vld [vmem:[#allocation4 + $0x40] sm:$0xf]
        %v302 = vld [vmem:[#allocation4 + $0x44] sm:$0xf]
        %v303 = vld [vmem:[#allocation4 + $0x48] sm:$0xf]
        %v304 = vld [vmem:[#allocation4 + $0x4c] sm:$0xf]
        %v305 = vld [vmem:[#allocation4 + $0x50] sm:$0xf]
        %v306 = vld [vmem:[#allocation4 + $0x54] sm:$0xf]
        %v307 = vld [vmem:[#allocation4 + $0x58] sm:$0xf]
        %v308 = vld [vmem:[#allocation4 + $0x5c] sm:$0xf]
        %v309 = vld [vmem:[%s3] sm:$0x1f]
        %v310 = vld [vmem:[%s4] sm:$0x1]
        %v311 = vld [vmem:[%s5] sm:$0x1]
        %v312 = vld [vmem:[%s2] sm:$0x1]
        %v313 = vadd.f32 %v312, %v309
        %v316 = vunpack.c.l.s4 1983009808
        %v317 = vunpack.c.0.s8 %v316
        %v318 = vlaneseq
        %v319 = vshrl.u32 %v318, 7
        %v320 = vsub.s32 %v317, %v319
        %v321 = vrot.slane %v284, %v320
        %v322 = vcombine.high %v321, %v321
        %v348 = vunpack.c.l.b16 %v285
        %v349 = vunpack.c.l.b16 %v286
        %v350 = vunpack.c.l.b16 %v287
        %v351 = vunpack.c.l.b16 %v288
        %v352 = vunpack.c.l.b16 %v289
        %v353 = vunpack.c.l.b16 %v290
        %v354 = vunpack.c.l.b16 %v291
        %v355 = vunpack.c.l.b16 %v292
        %v356 = vunpack.c.l.b16 %v293
        %v357 = vunpack.c.l.b16 %v294
        %v358 = vunpack.c.l.b16 %v295
        %v359 = vunpack.c.l.b16 %v296
        %v360 = vunpack.c.l.b16 %v297
        %v361 = vunpack.c.l.b16 %v298
        %v362 = vunpack.c.l.b16 %v299
        %v363 = vunpack.c.l.b16 %v300
        %v364 = vunpack.c.l.b16 %v301
        %v365 = vunpack.c.l.b16 %v302
        %v366 = vunpack.c.l.b16 %v303
        %v367 = vunpack.c.l.b16 %v304
        %v368 = vunpack.c.l.b16 %v305
        %v369 = vunpack.c.l.b16 %v306
        %v370 = vunpack.c.l.b16 %v307
        %v371 = vunpack.c.l.b16 %v308
        %v372 = vpack.c.b16 %v349, %v348
        %v373 = vpack.c.b16 %v351, %v350
        %v374 = vpack.c.b16 %v353, %v352
        %v375 = vpack.c.b16 %v355, %v354
        %v376 = vpack.c.b16 %v357, %v356
        %v377 = vpack.c.b16 %v359, %v358
        %v378 = vpack.c.b16 %v361, %v360
        %v379 = vpack.c.b16 %v363, %v362
        %v380 = vpack.c.b16 %v365, %v364
        %v381 = vpack.c.b16 %v367, %v366
        %v382 = vpack.c.b16 %v369, %v368
        %v383 = vpack.c.b16 %v371, %v370
        %v397 = vrot.slane %v309, 1
        %vm399 = vcmask 523264
        %v401 = vsel %vm399, %v322, 0
        %403 = vmatprep.subr.bf16.mxu0 0
        %404 = vmatpush1.bf16.msra.mxu0 %v372
        %405 = vmatprep.subr.bf16.mxu0 0
        %406 = vmatpush1.bf16.msra.mxu0 %v373
        %407 = vmatprep.subr.bf16.mxu0 0
        %408 = vmatpush1.bf16.msra.mxu0 %v374
        %409 = vmatprep.subr.bf16.mxu0 0
        %410 = vmatpush1.bf16.msra.mxu0 %v375
        %411 = vmatprep.subr.bf16.mxu0 0
        %412 = vmatpush1.bf16.msra.mxu0 %v376
        %413 = vmatprep.subr.bf16.mxu0 0
        %414 = vmatpush1.bf16.msra.mxu0 %v377
        %415 = vmatprep.subr.bf16.mxu0 0
        %416 = vmatpush1.bf16.msra.mxu0 %v378
        %417 = vmatprep.subr.bf16.mxu0 0
        %418 = vmatpush1.bf16.msra.mxu0 %v379
        %419 = vmatprep.subr.bf16.mxu0 0
        %420 = vmatpush1.bf16.msra.mxu0 %v380
        %421 = vmatprep.subr.bf16.mxu0 0
        %422 = vmatpush1.bf16.msra.mxu0 %v381
        %423 = vmatprep.subr.bf16.mxu0 0
        %424 = vmatpush1.bf16.msra.mxu0 %v382
        %425 = vmatprep.subr.bf16.mxu0 0
        %426 = vmatpush1.bf16.msra.mxu0 %v383
        %427 = vmatprep.subr.bf16.mxu0 0
        %428 = vmatpush1.bf16.msra.mxu0 0
        %429 = vmatprep.subr.bf16.mxu0 0
        %430 = vmatpush1.bf16.msra.mxu0 0
        %431 = vmatprep.subr.bf16.mxu0 0
        %432 = vmatpush1.bf16.msra.mxu0 0
        %433 = vmatprep.subr.bf16.mxu0 0
        %434 = vmatpush1.bf16.msra.mxu0 0
        %435 = vmatprep.mubr.bf16.mxu0 %v401
        %436 = vmatmul.mubr.bf16.gmra.mrb[0].mxu0 %v321
        %v437 = vpop.f32.mrb[0].mxu0
        %v438 = vadd.f32 %v397, %v437
        %v439 = vpop.f32.mrb[0].mxu0
        %v440 = vpop.f32.mrb[0].mxu0
        %v441 = vpop.f32.mrb[0].mxu0
        %442 = vdwg.mxu0
        %vm443 = vcmask 1040384
        %v444 = vsel %vm443, %v313, 0.0
        %445 = vadd.xlane.f32.xlu0 %v444
        %v446 = vpop.xlane.xlu0 %445
        %v447 = vrcp.pop 128.0
        %v448 = vmul.f32 %v446, %v447
        %v449 = vsub.f32 %v313, %v448
        %v450 = vmul.f32 %v449, %v449
        %v451 = vsel %vm443, %v450, 0.0
        %452 = vadd.xlane.f32.xlu0 %v451
        %v453 = vpop.xlane.xlu0 %452
        %v454 = vmul.f32 %v453, %v447
        %v455 = vadd.f32 %v454, 1e-05
        %v456 = vrsqrt.pop %v455
        %v457 = vmul.f32 %v449, %v456
        %v458 = vmul.f32 %v457, %v310
        %v459 = vadd.f32 %v458, %v311
        %460 = vst [vmem:[%s282] sm:$0x1] %v459
        %vm461 = vcmask 1043456
        %v462 = vsel %vm461, %v438, 0.0
        %463 = vadd.xlane.f32.xlu0 %v462
        %v464 = vpop.xlane.xlu0 %463
        %v465 = vmul.f32 %v464, %v447
        %v466 = vsub.f32 %v438, %v465
        %v467 = vmul.f32 %v466, %v466
        %v468 = vsel %vm461, %v467, 0.0
        %469 = vadd.xlane.f32.xlu0 %v468
        %v470 = vpop.xlane.xlu0 %469
        %v471 = vmul.f32 %v470, %v447
        %v472 = vadd.f32 %v471, 1e-05
        %v473 = vrsqrt.pop %v472
        %v474 = vmul.f32 %v466, %v473
        %v476 = vlaneseq
        %v477 = vshrl.u32 %v476, 7
        %v478 = vsub.s32 0, %v477
        %v479 = vrot.slane %v310, %v478
        %v481 = vmul.f32 %v474, %v479
        %v483 = vlaneseq
        %v484 = vshrl.u32 %v483, 7
        %v485 = vsub.s32 0, %v484
        %v486 = vrot.slane %v311, %v485
        %v488 = vadd.f32 %v481, %v486
        %489 = vst [vmem:[%s282 + $0x1] sm:$0xf] %v488
        %p490 = scmp.lt.s32.totalorder %s21, 1
        %s491 = scalar_select %p490, %s21, 1
        %s492 = smul.addr %s491, 8
        %s493 = scalar_lea.vmem %s6, %s492
        // Predicated region
        $region53: #{tpu_custom_call.1} parent=43 // pred_check
          %p494 = pneg %p170
        $region54: #{tpu_custom_call.1} parent=43 // pred_check_branch
          %496 = sbr.rel (%p494) target = $region56
        $region55: #{tpu_custom_call.1} parent=43 // pred_region
          _
        $region56: #{tpu_custom_call.1} parent=43 // pred_fallthru
          _
      $region44: #{tpu_custom_call.1} parent=5 // pred_fallthru
        _
      %p497 = scmp.le.s32.totalorder 2, %s16
      // Predicated region
      $region57: #{tpu_custom_call.1} parent=5 // pred_check
        %p498 = pneg %p497
      $region58: #{tpu_custom_call.1} parent=5 // pred_check_branch
        %500 = sbr.rel (%p498) target = $region60
      $region59: #{tpu_custom_call.1} parent=5 // pred_region
        %s501 = ssub.s32 %s16, 2
        // Predicated region
        $region61: #{tpu_custom_call.1} parent=59 // pred_check
          %p502 = pneg %p176
        $region62: #{tpu_custom_call.1} parent=59 // pred_check_branch
          %504 = sbr.rel (%p502) target = $region64
        $region63: #{tpu_custom_call.1} parent=59 // pred_region
          %p505 = scmp.lt.s32.totalorder %s22, 1
          %s506 = scalar_select %p505, %s22, 1
          %s507 = smul.addr %s506, 8
          %s508 = scalar_lea.vmem %s6, %s507
        $region64: #{tpu_custom_call.1} parent=59 // pred_fallthru
          _
      $region60: #{tpu_custom_call.1} parent=5 // pred_fallthru
        _
    $region6: #{tpu_custom_call.1} parent=1 // loop_footer
      %s20 = sadd.s32 1, %s16
    $region7: #{tpu_custom_call.1} parent=1 // loop_footer_branch
      %15 = sbr.rel target = $region3
    $region8: #{tpu_custom_call.1} parent=1 // loop_exit
      _
    %509 = vsyncpa [#allocation3], 1
    %s510 = scalar_lea.sflag [#allocation3], 1
    %511 = vsyncpa %s510, 1
    %512 = vsyncpa [#allocation5], 1

</llo_original>
